<compile_context>
chip_gen: v7x
topology: tpu7x:2x2x1
jax: 0.10.0
libtpu: 0.0.40
codegen_flags: <defaults>
</compile_context>

<pallas_src>
import functools

import jax
import jax.numpy as jnp
from jax.experimental import pallas as pl
from jax.experimental.pallas import tpu as pltpu


def _round_up(x, m):
    return ((x + m - 1) // m) * m


# --------------------------------------------------------------------------
# Kernel
# --------------------------------------------------------------------------
def _ppo_fused_kernel(s_ref, w1_ref, b1_ref, aw2_ref, ab2_ref, cw2_ref, cb2_ref,
                      act_ref, val_ref, *, hidden_dim):
    # Fused layer 1 (actor || critic): one wide MXU matmul, f32 accumulation.
    # bf16 cast happens here (VPU) instead of a separate XLA pass in HBM.
    s = s_ref[...].astype(w1_ref.dtype)                               # [tb, S]
    h = jnp.dot(s, w1_ref[...], preferred_element_type=jnp.float32)   # [tb, 2H]
    h = jnp.maximum(h + b1_ref[...], 0.0)                             # bias+ReLU (f32, VPU)

    h_a = h[:, :hidden_dim]      # actor hidden  (lane-aligned split at 128)
    h_c = h[:, hidden_dim:]      # critic hidden

    # Actor head: MXU matmul (bf16 operands, f32 acc); tanh only on A lanes (EUP).
    a = jnp.dot(h_a.astype(aw2_ref.dtype), aw2_ref[...],
                preferred_element_type=jnp.float32) + ab2_ref[...]    # [tb, A]
    act_ref[...] = jnp.tanh(a)

    # Critic head: kept fully in f32 (VPU multiply + XLU lane reduction).
    val_ref[...] = jnp.sum(h_c * cw2_ref[...], axis=-1, keepdims=True) + cb2_ref[...]


# --------------------------------------------------------------------------
# Parameter packing (done once, outside the kernel)
# --------------------------------------------------------------------------
def pack_params(params, matmul_dtype=jnp.bfloat16):
    """Fuse actor/critic first-layer weights; keep critic head in f32."""
    aw1, ab1 = params["aw1"], params["ab1"]     # [S, H], [1, H]
    aw2, ab2 = params["aw2"], params["ab2"]     # [H, A], [1, A]
    cw1, cb1 = params["cw1"], params["cb1"]     # [S, H], [1, H]
    cw2, cb2 = params["cw2"], params["cb2"]     # [H, 1], [1, 1]

    S, H = aw1.shape
    A = aw2.shape[1]

    return dict(
        w1=jnp.concatenate([aw1, cw1], axis=1).astype(matmul_dtype),  # [S, 2H]
        b1=jnp.concatenate([ab1, cb1], axis=1).astype(jnp.float32),   # [1, 2H]
        aw2=aw2.astype(matmul_dtype),                                 # [H, A]
        ab2=ab2.astype(jnp.float32),                                  # [1, A]
        cw2=cw2.T.astype(jnp.float32),                                # [1, H] (f32)
        cb2=cb2.astype(jnp.float32),                                  # [1, 1] (f32)
        state_dim=S, hidden_dim=H, action_dim=A,
    )


# --------------------------------------------------------------------------
# Wrapper
# --------------------------------------------------------------------------
def ppo_agent_forward(state, packed, *, batch_tile=4096):
    """state: [B, state_dim] f32; packed: output of pack_params."""
    B, S = state.shape
    A = packed["action_dim"]
    H = packed["hidden_dim"]
    H2 = 2 * H

    # Batch tile: multiple of 8 (sublane).  Big tiles amortize the ~0.35us
    # per-grid-step overhead; the 8192 cap keeps the in-kernel intermediates
    # (h f32 [tb, 2H] + bf16 casts + double-buffered I/O) well inside v7x's
    # 64 MiB VMEM.  No jnp.pad: partial tail block is handled by Pallas (its
    # out-of-bounds rows are never written back).
    tb = min(_round_up(min(batch_tile, B), 8), 8192)
    if B > 1024:
        # Ensure >= 2 grid steps so v7x's 2 TensorCores both get work.
        tb = min(tb, max(1024, _round_up(pl.cdiv(B, 2), 8)))
    grid = (pl.cdiv(B, tb),)

    flops = 2 * B * S * H2 + 2 * B * H * A + 2 * B * H
    bytes_accessed = (
        B * S * state.dtype.itemsize
        + packed["w1"].size * packed["w1"].dtype.itemsize
        + packed["aw2"].size * packed["aw2"].dtype.itemsize
        + (packed["b1"].size + packed["ab2"].size
           + packed["cw2"].size + packed["cb2"].size) * 4
        + B * (A + 1) * 4
    )

    action, value = pl.pallas_call(
        functools.partial(_ppo_fused_kernel, hidden_dim=H),
        out_shape=(jax.ShapeDtypeStruct((B, A), jnp.float32),
                   jax.ShapeDtypeStruct((B, 1), jnp.float32)),
        grid=grid,
        in_specs=[
            pl.BlockSpec((tb, S), lambda i: (i, 0)),    # state: batch-tiled, f32
            pl.BlockSpec((S, H2), lambda i: (0, 0)),    # W1 (actor||critic): resident
            pl.BlockSpec((1, H2), lambda i: (0, 0)),    # b1: resident
            pl.BlockSpec((H, A), lambda i: (0, 0)),     # actor W2: resident
            pl.BlockSpec((1, A), lambda i: (0, 0)),     # actor b2: resident
            pl.BlockSpec((1, H), lambda i: (0, 0)),     # critic w2 row (f32): resident
            pl.BlockSpec((1, 1), lambda i: (0, 0)),     # critic b2 (f32): resident
        ],
        out_specs=(
            pl.BlockSpec((tb, A), lambda i: (i, 0)),    # action: narrow output
            pl.BlockSpec((tb, 1), lambda i: (i, 0)),    # value: narrow output
        ),
        compiler_params=pltpu.CompilerParams(
            dimension_semantics=("parallel",),          # v7x: 2 TCs split the batch
            vmem_limit_bytes=48 * 1024 * 1024,          # headroom on all generations
        ),
        cost_estimate=pl.CostEstimate(
            flops=flops,
            transcendentals=B * A,
            bytes_accessed=bytes_accessed,
        ),
    )(state, packed["w1"], packed["b1"], packed["aw2"], packed["ab2"],
      packed["cw2"], packed["cb2"])

    return action, value


# --------------------------------------------------------------------------
# Init + pure-JAX reference
# --------------------------------------------------------------------------
def init_params(key, state_dim, action_dim=1, hidden_dim=128):
    """PyTorch nn.Linear-style init: U(-1/sqrt(fan_in), 1/sqrt(fan_in))."""
    ks = jax.random.split(key, 8)

    def linear(kw, kb, fan_in, fan_out):
        bound = 1.0 / jnp.sqrt(jnp.float32(fan_in))
        w = jax.random.uniform(kw, (fan_in, fan_out), jnp.float32, -bound, bound)
        b = jax.random.uniform(kb, (1, fan_out), jnp.float32, -bound, bound)
        return w, b

    aw1, ab1 = linear(ks[0], ks[1], state_dim, hidden_dim)
    aw2, ab2 = linear(ks[2], ks[3], hidden_dim, action_dim)
    cw1, cb1 = linear(ks[4], ks[5], state_dim, hidden_dim)
    cw2, cb2 = linear(ks[6], ks[7], hidden_dim, 1)
    return dict(aw1=aw1, ab1=ab1, aw2=aw2, ab2=ab2,
                cw1=cw1, cb1=cb1, cw2=cw2, cb2=cb2)


def reference_forward(state, p):
    h_a = jnp.maximum(state @ p["aw1"] + p["ab1"], 0.0)
    action = jnp.tanh(h_a @ p["aw2"] + p["ab2"])
    h_c = jnp.maximum(state @ p["cw1"] + p["cb1"], 0.0)
    value = h_c @ p["cw2"] + p["cb2"]
    return action, value


# --------------------------------------------------------------------------
# Demo / self-check
# --------------------------------------------------------------------------
if __name__ == "__main__":
    key = jax.random.PRNGKey(0)
    k_state, k_params = jax.random.split(key)

    B, STATE_DIM, ACTION_DIM, HIDDEN_DIM = 8, 32, 1, 128

    state = jax.random.normal(k_state, (B, STATE_DIM), jnp.float32)
    params = init_params(k_params, STATE_DIM, ACTION_DIM, HIDDEN_DIM)

    # bf16 MXU operands for layer 1 / actor layer 2 (f32 accumulate); the
    # critic head stays in f32.  Use matmul_dtype=jnp.float32 for exact f32.
    packed = pack_params(params, matmul_dtype=jnp.bfloat16)

    action, value = ppo_agent_forward(state, packed)
    jax.block_until_ready((action, value))

    # sanity check against the full-precision pure-JAX reference
    ref_action, ref_value = reference_forward(state, params)
    assert action.shape == (B, ACTION_DIM) and value.shape == (B, 1)
    assert jnp.allclose(action, ref_action, atol=2e-2, rtol=2e-2), (
        float(jnp.max(jnp.abs(action - ref_action))))
    assert jnp.allclose(value, ref_value, atol=2e-2, rtol=2e-2), (
        float(jnp.max(jnp.abs(value - ref_value))))

    print("KERNEL_OK")
</pallas_src>

<mosaic_0001>
module attributes {stable_mosaic.version = 11 : i64} {
  func.func @_ppo_fused_kernel(%arg0: i32, %arg1: memref<8x32xf32, #tpu.memory_space<vmem>>, %arg2: memref<32x256xbf16, #tpu.memory_space<vmem>>, %arg3: memref<1x256xf32, #tpu.memory_space<vmem>>, %arg4: memref<128x1xbf16, #tpu.memory_space<vmem>>, %arg5: memref<1x1xf32, #tpu.memory_space<vmem>>, %arg6: memref<1x128xf32, #tpu.memory_space<vmem>>, %arg7: memref<1x1xf32, #tpu.memory_space<vmem>>, %arg8: memref<8x1xf32, #tpu.memory_space<vmem>>, %arg9: memref<8x1xf32, #tpu.memory_space<vmem>>) attributes {dimension_semantics = [#tpu.dimension_semantics<parallel>], iteration_bounds = array<i64: 1>, scalar_prefetch = 0 : i64, scratch_operands = 0 : i64, tpu.core_type = #tpu.core_type<tc>, window_params = [{transform_indices = @transform_0, window_bounds = array<i64: 8, 32>}, {pipeline_mode = #tpu.pipeline_mode<synchronous>, transform_indices = @transform_1, window_bounds = array<i64: 32, 256>}, {pipeline_mode = #tpu.pipeline_mode<synchronous>, transform_indices = @transform_2, window_bounds = array<i64: 1, 256>}, {pipeline_mode = #tpu.pipeline_mode<synchronous>, transform_indices = @transform_3, window_bounds = array<i64: 128, 1>}, {pipeline_mode = #tpu.pipeline_mode<synchronous>, transform_indices = @transform_4, window_bounds = array<i64: 1, 1>}, {pipeline_mode = #tpu.pipeline_mode<synchronous>, transform_indices = @transform_5, window_bounds = array<i64: 1, 128>}, {pipeline_mode = #tpu.pipeline_mode<synchronous>, transform_indices = @transform_6, window_bounds = array<i64: 1, 1>}, {transform_indices = @transform_7, window_bounds = array<i64: 8, 1>}, {transform_indices = @transform_8, window_bounds = array<i64: 8, 1>}]} {
    %c0 = arith.constant 0 : index
    %c0_0 = arith.constant 0 : index
    %0 = vector.load %arg1[%c0, %c0_0] : memref<8x32xf32, #tpu.memory_space<vmem>>, vector<8x32xf32>
    %1 = arith.truncf %0 : vector<8x32xf32> to vector<8x32xbf16>
    %c0_1 = arith.constant 0 : index
    %c0_2 = arith.constant 0 : index
    %2 = vector.load %arg2[%c0_1, %c0_2] : memref<32x256xbf16, #tpu.memory_space<vmem>>, vector<32x256xbf16>
    %cst = arith.constant dense<0.000000e+00> : vector<8x256xf32>
    %3 = tpu.matmul %1, %2, %cst {dimension_numbers = #tpu.dot_dimension_numbers<[1], [0], [0], [1], [0, 0, 1, 1], [], []>} : vector<8x32xbf16>, vector<32x256xbf16>, vector<8x256xf32> -> vector<8x256xf32>
    %c0_3 = arith.constant 0 : index
    %c0_4 = arith.constant 0 : index
    %4 = vector.load %arg3[%c0_3, %c0_4] : memref<1x256xf32, #tpu.memory_space<vmem>>, vector<1x256xf32>
    %5 = vector.broadcast %4 : vector<1x256xf32> to vector<8x256xf32>
    %6 = arith.addf %3, %5 : vector<8x256xf32>
    %cst_5 = arith.constant 0.000000e+00 : f32
    %7 = vector.broadcast %cst_5 : f32 to vector<8x256xf32>
    %8 = arith.maximumf %6, %7 : vector<8x256xf32>
    %9 = vector.extract_strided_slice %8 {offsets = [0, 0], sizes = [8, 128], strides = [1, 1]} : vector<8x256xf32> to vector<8x128xf32>
    %10 = vector.extract_strided_slice %8 {offsets = [0, 128], sizes = [8, 128], strides = [1, 1]} : vector<8x256xf32> to vector<8x128xf32>
    %11 = arith.truncf %9 : vector<8x128xf32> to vector<8x128xbf16>
    %c0_6 = arith.constant 0 : index
    %c0_7 = arith.constant 0 : index
    %12 = vector.load %arg4[%c0_6, %c0_7] : memref<128x1xbf16, #tpu.memory_space<vmem>>, vector<128x1xbf16>
    %cst_8 = arith.constant dense<0.000000e+00> : vector<8x1xf32>
    %13 = tpu.matmul %11, %12, %cst_8 {dimension_numbers = #tpu.dot_dimension_numbers<[1], [0], [0], [1], [0, 0, 1, 1], [], []>} : vector<8x128xbf16>, vector<128x1xbf16>, vector<8x1xf32> -> vector<8x1xf32>
    %c0_9 = arith.constant 0 : index
    %c0_10 = arith.constant 0 : index
    %14 = vector.load %arg5[%c0_9, %c0_10] : memref<1x1xf32, #tpu.memory_space<vmem>>, vector<1x1xf32>
    %15 = vector.broadcast %14 : vector<1x1xf32> to vector<8x1xf32>
    %16 = arith.addf %13, %15 : vector<8x1xf32>
    %17 = math.tanh %16 : vector<8x1xf32>
    %c0_11 = arith.constant 0 : index
    %c0_12 = arith.constant 0 : index
    %18 = vector.load %arg8[%c0_11, %c0_12] : memref<8x1xf32, #tpu.memory_space<vmem>>, vector<8x1xf32>
    tpu.vector_store %arg8[%c0_11, %c0_12], %17 {strides = array<i32>} : memref<8x1xf32, #tpu.memory_space<vmem>>, vector<8x1xf32>,
    %c0_13 = arith.constant 0 : index
    %c0_14 = arith.constant 0 : index
    %19 = vector.load %arg6[%c0_13, %c0_14] : memref<1x128xf32, #tpu.memory_space<vmem>>, vector<1x128xf32>
    %20 = vector.broadcast %19 : vector<1x128xf32> to vector<8x128xf32>
    %21 = arith.mulf %10, %20 : vector<8x128xf32>
    %cst_15 = arith.constant dense<0.000000e+00> : vector<8xf32>
    %22 = vector.multi_reduction <add>, %21, %cst_15 [1] : vector<8x128xf32> to vector<8xf32>
    %23 = vector.shape_cast %22 : vector<8xf32> to vector<8x1xf32>
    %c0_16 = arith.constant 0 : index
    %c0_17 = arith.constant 0 : index
    %24 = vector.load %arg7[%c0_16, %c0_17] : memref<1x1xf32, #tpu.memory_space<vmem>>, vector<1x1xf32>
    %25 = vector.broadcast %24 : vector<1x1xf32> to vector<8x1xf32>
    %26 = arith.addf %23, %25 : vector<8x1xf32>
    %c0_18 = arith.constant 0 : index
    %c0_19 = arith.constant 0 : index
    %27 = vector.load %arg9[%c0_18, %c0_19] : memref<8x1xf32, #tpu.memory_space<vmem>>, vector<8x1xf32>
    tpu.vector_store %arg9[%c0_18, %c0_19], %26 {strides = array<i32>} : memref<8x1xf32, #tpu.memory_space<vmem>>, vector<8x1xf32>,
    return
  }
  func.func @transform_0(%arg0: i32) -> (i32, i32) {
    %c0_i32 = arith.constant 0 : i32
    %c0_i32_0 = arith.constant 0 : i32
    return %arg0, %c0_i32 : i32, i32
  }
  func.func @transform_1(%arg0: i32) -> (i32, i32) {
    %c0_i32 = arith.constant 0 : i32
    %c0_i32_0 = arith.constant 0 : i32
    %c0_i32_1 = arith.constant 0 : i32
    return %c0_i32, %c0_i32_0 : i32, i32
  }
  func.func @transform_2(%arg0: i32) -> (i32, i32) {
    %c0_i32 = arith.constant 0 : i32
    %c0_i32_0 = arith.constant 0 : i32
    %c0_i32_1 = arith.constant 0 : i32
    return %c0_i32, %c0_i32_0 : i32, i32
  }
  func.func @transform_3(%arg0: i32) -> (i32, i32) {
    %c0_i32 = arith.constant 0 : i32
    %c0_i32_0 = arith.constant 0 : i32
    %c0_i32_1 = arith.constant 0 : i32
    return %c0_i32, %c0_i32_0 : i32, i32
  }
  func.func @transform_4(%arg0: i32) -> (i32, i32) {
    %c0_i32 = arith.constant 0 : i32
    %c0_i32_0 = arith.constant 0 : i32
    %c0_i32_1 = arith.constant 0 : i32
    return %c0_i32, %c0_i32_0 : i32, i32
  }
  func.func @transform_5(%arg0: i32) -> (i32, i32) {
    %c0_i32 = arith.constant 0 : i32
    %c0_i32_0 = arith.constant 0 : i32
    %c0_i32_1 = arith.constant 0 : i32
    return %c0_i32, %c0_i32_0 : i32, i32
  }
  func.func @transform_6(%arg0: i32) -> (i32, i32) {
    %c0_i32 = arith.constant 0 : i32
    %c0_i32_0 = arith.constant 0 : i32
    %c0_i32_1 = arith.constant 0 : i32
    return %c0_i32, %c0_i32_0 : i32, i32
  }
  func.func @transform_7(%arg0: i32) -> (i32, i32) {
    %c0_i32 = arith.constant 0 : i32
    %c0_i32_0 = arith.constant 0 : i32
    return %arg0, %c0_i32 : i32, i32
  }
  func.func @transform_8(%arg0: i32) -> (i32, i32) {
    %c0_i32 = arith.constant 0 : i32
    %c0_i32_0 = arith.constant 0 : i32
    return %arg0, %c0_i32 : i32, i32
  }
}

</mosaic_0001>

<llo_original>
// kernel: tpu_custom_call.1
$region0: #{tpu_custom_call.1}
  #allocation0 [shape = 'u32[]', space=smem, size = 0x4, offset = 0x4, fixed_abs, tag = 'smem constant byte address 0x4 - core index']
  #allocation1 [shape = 'u32[144,128]{1,0:T(1,128)}', space=vmem, size = 0x12000, scoped, tag = 'internal scratch']
  #allocation2 [shape = 'f32[1,1]{1,0:T(1,128)S(1)}', space=vmem, size = 0x200, scoped, tag = 'scoped memory for tpu_custom_call.1']
  #allocation3 [shape = 'f32[1,1]{1,0:T(1,128)S(1)}', space=vmem, size = 0x200, scoped, tag = 'scoped memory for tpu_custom_call.1']
  %s0 = inlined_call_operand.vmem [shape: f32[8,32], index: 0, kind: input, shape index: {}]
  %s1 = inlined_call_operand.vmem [shape: bf16[32,256], index: 1, kind: input, shape index: {}]
  %s2 = inlined_call_operand.vmem [shape: f32[1,256], index: 2, kind: input, shape index: {}]
  %s3 = inlined_call_operand.vmem [shape: bf16[128,1], index: 3, kind: input, shape index: {}]
  %s4 = inlined_call_operand.<no memory space> [shape: f32[1,1], index: 4, kind: input, shape index: {}]
  %s5 = inlined_call_operand.vmem [shape: f32[1,128], index: 5, kind: input, shape index: {}]
  %s6 = inlined_call_operand.<no memory space> [shape: f32[1,1], index: 6, kind: input, shape index: {}]
  %s7 = inlined_call_operand.vmem [shape: f32[8,1], index: 7, kind: output, shape index: {0}]
  %s8 = inlined_call_operand.vmem [shape: f32[8,1], index: 8, kind: output, shape index: {1}]
  %9 = xla_tuple %s7, %s8
  %s10 = sld [smem:[#allocation0]]
  $region46: #{tpu_custom_call.1} parent=0
    _
  %s12 = ssub.s32 1, %s10
  %s13 = scalar_select 0, %s12, %s10
  %v14 = vstv %s4
  %15 = vst [vmem:[#allocation2] sm:$0x1] %v14
  %v16 = vstv %s6
  %17 = vst [vmem:[#allocation3] sm:$0x1] %v16
  // Predicated region
  $region2: #{tpu_custom_call.1} parent=0 // pred_check
    _
  $region3: #{tpu_custom_call.1} parent=0 // pred_check_branch
    %19 = sbr.rel (0) target = $region5
  $region4: #{tpu_custom_call.1} parent=0 // pred_region
    _
  $region5: #{tpu_custom_call.1} parent=0 // pred_fallthru
    _
  // Predicated region
  $region6: #{tpu_custom_call.1} parent=0 // pred_check
    _
  $region7: #{tpu_custom_call.1} parent=0 // pred_check_branch
    %21 = sbr.rel (0) target = $region9
  $region8: #{tpu_custom_call.1} parent=0 // pred_region
    _
  $region9: #{tpu_custom_call.1} parent=0 // pred_fallthru
    _
  // Predicated region
  $region10: #{tpu_custom_call.1} parent=0 // pred_check
    _
  $region11: #{tpu_custom_call.1} parent=0 // pred_check_branch
    %23 = sbr.rel (0) target = $region13
  $region12: #{tpu_custom_call.1} parent=0 // pred_region
    _
  $region13: #{tpu_custom_call.1} parent=0 // pred_fallthru
    _
  // Predicated region
  $region14: #{tpu_custom_call.1} parent=0 // pred_check
    _
  $region15: #{tpu_custom_call.1} parent=0 // pred_check_branch
    %25 = sbr.rel (0) target = $region17
  $region16: #{tpu_custom_call.1} parent=0 // pred_region
    _
  $region17: #{tpu_custom_call.1} parent=0 // pred_fallthru
    _
  // Predicated region
  $region18: #{tpu_custom_call.1} parent=0 // pred_check
    _
  $region19: #{tpu_custom_call.1} parent=0 // pred_check_branch
    %27 = sbr.rel (0) target = $region21
  $region20: #{tpu_custom_call.1} parent=0 // pred_region
    _
  $region21: #{tpu_custom_call.1} parent=0 // pred_fallthru
    _
  // Predicated region
  $region22: #{tpu_custom_call.1} parent=0 // pred_check
    _
  $region23: #{tpu_custom_call.1} parent=0 // pred_check_branch
    %29 = sbr.rel (0) target = $region25
  $region24: #{tpu_custom_call.1} parent=0 // pred_region
    _
  $region25: #{tpu_custom_call.1} parent=0 // pred_fallthru
    _
  // Predicated region
  $region26: #{tpu_custom_call.1} parent=0 // pred_check
    _
  $region27: #{tpu_custom_call.1} parent=0 // pred_check_branch
    %31 = sbr.rel (0) target = $region29
  $region28: #{tpu_custom_call.1} parent=0 // pred_region
    _
  $region29: #{tpu_custom_call.1} parent=0 // pred_fallthru
    _
  %v33 = vld [vmem:[%s0] sm:$0xff]
  %v34 = vpack.c.bf16 %v33, %v33
  %v35 = vld [vmem:[%s1] sm:$0xff]
  %v36 = vld [vmem:[%s1 + $0x8] sm:$0xff]
  %v37 = vld [vmem:[%s1 + $0x10] sm:$0xff]
  %v38 = vld [vmem:[%s1 + $0x18] sm:$0xff]
  %v39 = vld [vmem:[%s2] sm:$0x3]
  %v41 = vlaneseq
  %v42 = vshrl.u32 %v41, 7
  %v43 = vsub.s32 0, %v42
  %v44 = vrot.slane %v39, %v43
  %v45 = vlaneseq
  %v46 = vshrl.u32 %v45, 7
  %v47 = vsub.s32 1, %v46
  %v48 = vrot.slane %v39, %v47
  %v55 = vunpack.c.l.b16 %v35
  %v56 = vunpack.c.h.b16 %v35
  %v57 = vunpack.c.l.b16 %v36
  %v58 = vunpack.c.h.b16 %v36
  %v59 = vunpack.c.l.b16 %v37
  %v60 = vunpack.c.h.b16 %v37
  %v61 = vunpack.c.l.b16 %v38
  %v62 = vunpack.c.h.b16 %v38
  %v63 = vpack.c.b16 %v57, %v55
  %v64 = vpack.c.b16 %v58, %v56
  %v65 = vpack.c.b16 %v61, %v59
  %v66 = vpack.c.b16 %v62, %v60
  %vm71 = vcmask 261120
  %v73 = vsel %vm71, %v34, 0
  %75 = vmatprep.subr.bf16.mxu0 %v64
  %76 = vmatpush1.bf16.msra.mxu0 %v63
  %77 = vmatprep.subr.bf16.mxu0 %v66
  %78 = vmatpush1.bf16.msra.mxu0 %v65
  %79 = vmatprep.subr.bf16.mxu0 0
  %80 = vmatpush1.bf16.msra.mxu0 0
  %81 = vmatprep.subr.bf16.mxu0 0
  %82 = vmatpush1.bf16.msra.mxu0 0
  %83 = vmatprep.subr.bf16.mxu0 0
  %84 = vmatpush1.bf16.msra.mxu0 0
  %85 = vmatprep.subr.bf16.mxu0 0
  %86 = vmatpush1.bf16.msra.mxu0 0
  %87 = vmatprep.subr.bf16.mxu0 0
  %88 = vmatpush1.bf16.msra.mxu0 0
  %89 = vmatprep.subr.bf16.mxu0 0
  %90 = vmatpush1.bf16.msra.mxu0 0
  %91 = vmatprep.subr.bf16.mxu0 0
  %92 = vmatpush1.bf16.msra.mxu0 0
  %93 = vmatprep.subr.bf16.mxu0 0
  %94 = vmatpush1.bf16.msra.mxu0 0
  %95 = vmatprep.subr.bf16.mxu0 0
  %96 = vmatpush1.bf16.msra.mxu0 0
  %97 = vmatprep.subr.bf16.mxu0 0
  %98 = vmatpush1.bf16.msra.mxu0 0
  %99 = vmatprep.subr.bf16.mxu0 0
  %100 = vmatpush1.bf16.msra.mxu0 0
  %101 = vmatprep.subr.bf16.mxu0 0
  %102 = vmatpush1.bf16.msra.mxu0 0
  %103 = vmatprep.subr.bf16.mxu0 0
  %104 = vmatpush1.bf16.msra.mxu0 0
  %105 = vmatprep.subr.bf16.mxu0 0
  %106 = vmatpush1.bf16.msra.mxu0 0
  %107 = vmatprep.mubr.bf16.mxu0 0
  %108 = vmatmul.mubr.bf16.gmra.mrb[0].mxu0 %v73
  %v109 = vpop.f32.mrb[0].mxu0
  %v110 = vadd.f32 %v44, %v109
  %v111 = vpop.f32.mrb[0].mxu0
  %v112 = vadd.f32 %v48, %v111
  %v113 = vpop.f32.mrb[0].mxu0
  %v114 = vpop.f32.mrb[0].mxu0
  %115 = vdwg.mxu0
  %v116 = vmax.f32 %v110, 0.0
  %v117 = vmax.f32 %v112, 0.0
  %v118 = vpack.c.bf16 %v116, %v116
  %v119 = vld [vmem:[%s3] sm:$0xf]
  %v120 = vld [vmem:[%s3 + $0x4] sm:$0xf]
  %v121 = vld [vmem:[%s3 + $0x8] sm:$0xf]
  %v122 = vld [vmem:[%s3 + $0xc] sm:$0xf]
  %v123 = vld [vmem:[%s3 + $0x10] sm:$0xf]
  %v124 = vld [vmem:[%s3 + $0x14] sm:$0xf]
  %v125 = vld [vmem:[%s3 + $0x18] sm:$0xf]
  %v126 = vld [vmem:[%s3 + $0x1c] sm:$0xf]
  %v127 = vld [vmem:[%s3 + $0x20] sm:$0xf]
  %v128 = vld [vmem:[%s3 + $0x24] sm:$0xf]
  %v129 = vld [vmem:[%s3 + $0x28] sm:$0xf]
  %v130 = vld [vmem:[%s3 + $0x2c] sm:$0xf]
  %v131 = vld [vmem:[%s3 + $0x30] sm:$0xf]
  %v132 = vld [vmem:[%s3 + $0x34] sm:$0xf]
  %v133 = vld [vmem:[%s3 + $0x38] sm:$0xf]
  %v134 = vld [vmem:[%s3 + $0x3c] sm:$0xf]
  %v135 = vld [vmem:[#allocation2] sm:$0x1]
  %v137 = vlaneseq
  %v138 = vshrl.u32 %v137, 7
  %v139 = vsub.s32 0, %v138
  %v140 = vrot.slane %v135, %v139
  %v158 = vunpack.c.l.b16 %v119
  %v159 = vunpack.c.l.b16 %v120
  %v160 = vunpack.c.l.b16 %v121
  %v161 = vunpack.c.l.b16 %v122
  %v162 = vunpack.c.l.b16 %v123
  %v163 = vunpack.c.l.b16 %v124
  %v164 = vunpack.c.l.b16 %v125
  %v165 = vunpack.c.l.b16 %v126
  %v166 = vunpack.c.l.b16 %v127
  %v167 = vunpack.c.l.b16 %v128
  %v168 = vunpack.c.l.b16 %v129
  %v169 = vunpack.c.l.b16 %v130
  %v170 = vunpack.c.l.b16 %v131
  %v171 = vunpack.c.l.b16 %v132
  %v172 = vunpack.c.l.b16 %v133
  %v173 = vunpack.c.l.b16 %v134
  %v174 = vpack.c.b16 %v159, %v158
  %v175 = vpack.c.b16 %v161, %v160
  %v176 = vpack.c.b16 %v163, %v162
  %v177 = vpack.c.b16 %v165, %v164
  %v178 = vpack.c.b16 %v167, %v166
  %v179 = vpack.c.b16 %v169, %v168
  %v180 = vpack.c.b16 %v171, %v170
  %v181 = vpack.c.b16 %v173, %v172
  %190 = vmatprep.subr.bf16.mxu0 0
  %191 = vmatpush1.bf16.msra.mxu0 %v174
  %192 = vmatprep.subr.bf16.mxu0 0
  %193 = vmatpush1.bf16.msra.mxu0 %v175
  %194 = vmatprep.subr.bf16.mxu0 0
  %195 = vmatpush1.bf16.msra.mxu0 %v176
  %196 = vmatprep.subr.bf16.mxu0 0
  %197 = vmatpush1.bf16.msra.mxu0 %v177
  %198 = vmatprep.subr.bf16.mxu0 0
  %199 = vmatpush1.bf16.msra.mxu0 %v178
  %200 = vmatprep.subr.bf16.mxu0 0
  %201 = vmatpush1.bf16.msra.mxu0 %v179
  %202 = vmatprep.subr.bf16.mxu0 0
  %203 = vmatpush1.bf16.msra.mxu0 %v180
  %204 = vmatprep.subr.bf16.mxu0 0
  %205 = vmatpush1.bf16.msra.mxu0 %v181
  %206 = vmatprep.subr.bf16.mxu0 0
  %207 = vmatpush1.bf16.msra.mxu0 0
  %208 = vmatprep.subr.bf16.mxu0 0
  %209 = vmatpush1.bf16.msra.mxu0 0
  %210 = vmatprep.subr.bf16.mxu0 0
  %211 = vmatpush1.bf16.msra.mxu0 0
  %212 = vmatprep.subr.bf16.mxu0 0
  %213 = vmatpush1.bf16.msra.mxu0 0
  %214 = vmatprep.subr.bf16.mxu0 0
  %215 = vmatpush1.bf16.msra.mxu0 0
  %216 = vmatprep.subr.bf16.mxu0 0
  %217 = vmatpush1.bf16.msra.mxu0 0
  %218 = vmatprep.subr.bf16.mxu0 0
  %219 = vmatpush1.bf16.msra.mxu0 0
  %220 = vmatprep.subr.bf16.mxu0 0
  %221 = vmatpush1.bf16.msra.mxu0 0
  %222 = vmatprep.mubr.bf16.mxu0 0
  %223 = vmatmul.mubr.bf16.gmra.mrb[0].mxu0 %v118
  %v224 = vpop.f32.mrb[0].mxu0
  %v225 = vadd.f32 %v140, %v224
  %v226 = vpop.f32.mrb[0].mxu0
  %v227 = vpop.f32.mrb[0].mxu0
  %v228 = vpop.f32.mrb[0].mxu0
  %229 = vdwg.mxu0
  %v230 = vtanh.pop %v225
  %vm231 = vcmask 7168
  %232 = vst.msk [vmem:[%s7] sm:$0xff] %vm231, %v230
  %v233 = vld [vmem:[%s5] sm:$0x1]
  %v235 = vlaneseq
  %v236 = vshrl.u32 %v235, 7
  %v237 = vsub.s32 0, %v236
  %v238 = vrot.slane %v233, %v237
  %v240 = vmul.f32 %v117, %v238
  %241 = vadd.xlane.f32.xlu0 %v240
  %v242 = vpop.xlane.xlu0 %241
  %v243 = vld [vmem:[#allocation3] sm:$0x1]
  %v245 = vlaneseq
  %v246 = vshrl.u32 %v245, 7
  %v247 = vsub.s32 0, %v246
  %v248 = vrot.slane %v243, %v247
  %v250 = vadd.f32 %v242, %v248
  %251 = vst.msk [vmem:[%s8] sm:$0xff] %vm231, %v250
  // Predicated region
  $region30: #{tpu_custom_call.1} parent=0 // pred_check
    _
  $region31: #{tpu_custom_call.1} parent=0 // pred_check_branch
    %253 = sbr.rel (0) target = $region33
  $region32: #{tpu_custom_call.1} parent=0 // pred_region
    _
  $region33: #{tpu_custom_call.1} parent=0 // pred_fallthru
    _
  // Predicated region
  $region34: #{tpu_custom_call.1} parent=0 // pred_check
    _
  $region35: #{tpu_custom_call.1} parent=0 // pred_check_branch
    %255 = sbr.rel (0) target = $region37
  $region36: #{tpu_custom_call.1} parent=0 // pred_region
    _
  $region37: #{tpu_custom_call.1} parent=0 // pred_fallthru
    _
  // Predicated region
  $region38: #{tpu_custom_call.1} parent=0 // pred_check
    _
  $region39: #{tpu_custom_call.1} parent=0 // pred_check_branch
    %257 = sbr.rel (0) target = $region41
  $region40: #{tpu_custom_call.1} parent=0 // pred_region
    _
  $region41: #{tpu_custom_call.1} parent=0 // pred_fallthru
    _
  // Predicated region
  $region42: #{tpu_custom_call.1} parent=0 // pred_check
    _
  $region43: #{tpu_custom_call.1} parent=0 // pred_check_branch
    %259 = sbr.rel (0) target = $region45
  $region44: #{tpu_custom_call.1} parent=0 // pred_region
    _
  $region45: #{tpu_custom_call.1} parent=0 // pred_fallthru
    _

</llo_original>
